<compile_context>
chip_gen: v5e
topology: v5e:2x2
jax: 0.10.0
libtpu: 0.0.40
codegen_flags: <defaults>
</compile_context>

<pallas_src>
import functools

import jax
import jax.numpy as jnp
from jax import lax
from jax.experimental import pallas as pl
from jax.experimental.pallas import tpu as pltpu

EPS = 1e-5
_LANE = 128
_MAX_BLOCK_B = 1024           # cap keeps the head's transpose traffic to a few tiles
_PICK_VMEM_BUDGET = 20 << 20  # per-step budget used when choosing block_b (v7x-safe)


def _round_up(n, m):
    return ((n + m - 1) // m) * m


def _mlp_kernel(x_ref, w1_ref, w2_ref, w3_ref, w4_ref, bias_ref, out_ref):
    """Fused MLP: (matmul -> +bias -> relu) x3 -> head matmul -> sigmoid.

    BN (eval mode) and Linear biases are pre-folded; Dropout is identity.
    Matmuls run compute_dtype x compute_dtype -> f32 (single MXU pass for
    bf16); bias adds, ReLU and sigmoid stay in f32.
    """
    cdt = w1_ref.dtype
    x = x_ref[...]                      # already in compute dtype

    # block 1: Linear(D, 64) [+folded BN1] -> ReLU  (Dropout = identity, eval)
    h = jnp.dot(x, w1_ref[...], preferred_element_type=jnp.float32)
    h = jnp.maximum(h + bias_ref[0:1, 0:64], 0.0)

    # block 2: Linear(64, 32) [+folded BN2] -> ReLU
    h = jnp.dot(h.astype(cdt), w2_ref[...], preferred_element_type=jnp.float32)
    h = jnp.maximum(h + bias_ref[1:2, 0:32], 0.0)

    # block 3: Linear(32, 16) [+folded BN3] -> ReLU
    h = jnp.dot(h.astype(cdt), w3_ref[...], preferred_element_type=jnp.float32)
    h = jnp.maximum(h + bias_ref[2:3, 0:16], 0.0)

    # head: Linear(16, 1) -> Sigmoid, emitted lane-dense as (1, block_b):
    # (1,16) contracted with (block_b,16) over the last dims == w4_row @ h^T.
    logit = lax.dot_general(
        w4_ref[...], h.astype(cdt),
        dimension_numbers=(((1,), (1,)), ((), ())),
        preferred_element_type=jnp.float32,
    )
    out_ref[...] = jax.nn.sigmoid(logit + bias_ref[3:4, 0:1])


def _pick_block_b(batch_padded, d, x_itemsize):
    """Pick a 128-multiple batch tile.

    Prefers >=4 grid steps for large batches (each v7x TensorCore keeps a
    double-buffered stream under "parallel"), >=2 steps for medium batches,
    and bounds the per-step VMEM footprint (lane padding included).
    """
    d_pad = _round_up(max(d, 1), _LANE)
    if batch_padded >= 512:
        min_steps = 4
    elif batch_padded >= 256:
        min_steps = 2
    else:
        min_steps = 1
    for cand in (_MAX_BLOCK_B, 512, 256, 128):
        if batch_padded % cand != 0 or batch_padded // cand < min_steps:
            continue
        x_bytes = 2 * cand * d_pad * x_itemsize   # double-buffered x tile
        act_bytes = 3 * cand * _LANE * 4          # f32 h1/h2/h3, lane-padded
        out_bytes = 2 * 8 * cand * 4              # (1, block_b) pads to 8 sublanes
        if x_bytes + act_bytes + out_bytes <= _PICK_VMEM_BUDGET:
            return cand
    return 128


def _fold_bn(w, b, g, beta, m, v):
    """Fold eval-mode BatchNorm (and the Linear bias) into weight/bias (f32)."""
    s = g * lax.rsqrt(v + EPS)          # (1, dout)
    return w * s, (b - m) * s + beta


@functools.partial(jax.jit, static_argnames=("compute_dtype",))
def neologism_forward(x, params, compute_dtype=jnp.bfloat16):
    """Eval-mode forward. x: (B, input_size) f32 -> (B, 1) f32 probabilities."""
    B, D = x.shape
    p = params

    # ---- fold BN (+ bias) into weights and one lane-aligned bias slab ----
    w1f, b1f = _fold_bn(p["w1"], p["b1"], p["g1"], p["beta1"], p["mean1"], p["var1"])
    w2f, b2f = _fold_bn(p["w2"], p["b2"], p["g2"], p["beta2"], p["mean2"], p["var2"])
    w3f, b3f = _fold_bn(p["w3"], p["b3"], p["g3"], p["beta3"], p["mean3"], p["var3"])

    bias_slab = jnp.zeros((4, _LANE), jnp.float32)   # one operand instead of four
    bias_slab = bias_slab.at[0, :64].set(b1f[0])
    bias_slab = bias_slab.at[1, :32].set(b2f[0])
    bias_slab = bias_slab.at[2, :16].set(b3f[0])
    bias_slab = bias_slab.at[3, 0].set(p["b4"][0, 0])

    # Compute-dtype (bf16 by default) weights and input: halves x DMA bytes,
    # single-pass MXU matmuls; accumulation stays f32 inside the kernel.
    w1c = w1f.astype(compute_dtype)
    w2c = w2f.astype(compute_dtype)
    w3c = w3f.astype(compute_dtype)
    w4c = p["w4"].T.astype(compute_dtype)    # (1, 16) row for the lane-dense head
    xc = x.astype(compute_dtype)

    # ---- pad the batch to a 128 multiple (lane-dense tiles, pipelining,
    #      megacore sharding even for ragged batches); sliced back below ----
    B_pad = max(_round_up(B, _LANE), _LANE)
    if B_pad != B:
        xc = jnp.pad(xc, ((0, B_pad - B), (0, 0)))

    itemsize = jnp.dtype(compute_dtype).itemsize
    block_b = _pick_block_b(B_pad, D, itemsize)
    num_steps = B_pad // block_b

    flat_args = (xc, w1c, w2c, w3c, w4c, bias_slab)

    def full_spec(a):
        # small parameter array, fully resident in VMEM across all grid steps
        return pl.BlockSpec(a.shape, lambda i: (0, 0))

    # TODO(synk): consider pipeline_mode=pl.Buffered(3) on the x spec (v6e) once
    # per-step compute is tiny; left at the default 2-deep pipeline for safety.
    in_specs = [pl.BlockSpec((block_b, D), lambda i: (i, 0))]
    in_specs += [full_spec(a) for a in flat_args[1:]]
    # Lane-dense output: (1, B_pad) row with (1, block_b) blocks.
    out_spec = pl.BlockSpec((1, block_b), lambda i: (0, i))

    # ---- VMEM footprint estimate WITH (8,128) tile padding ----
    d_pad = _round_up(D, _LANE)
    est = (2 * block_b * d_pad * itemsize       # x, double-buffered
           + 2 * 8 * block_b * 4                # out (1,block_b) -> 8 sublanes
           + 3 * block_b * _LANE * 4)           # f32 h1/h2/h3, lane-padded
    for a in flat_args[1:]:
        r, c = a.shape
        est += 2 * _round_up(r, 8) * _round_up(c, _LANE) * jnp.dtype(a.dtype).itemsize
    # Raise the scoped limit only if needed; stay well below v7x's 64 MiB.
    vmem_limit = int(min(2 * est, 48 << 20)) if est > (16 << 20) else None

    cost = pl.CostEstimate(
        flops=2 * B_pad * (D * 64 + 64 * 32 + 32 * 16 + 16),
        transcendentals=2 * B_pad,              # sigmoid ~ exp + reciprocal per row
        bytes_accessed=B_pad * D * itemsize + B_pad * 4
        + sum(int(a.size) * jnp.dtype(a.dtype).itemsize for a in flat_args[1:]),
    )

    out = pl.pallas_call(
        _mlp_kernel,
        out_shape=jax.ShapeDtypeStruct((1, B_pad), jnp.float32),
        grid_spec=pltpu.PrefetchScalarGridSpec(
            num_scalar_prefetch=0,
            grid=(num_steps,),
            in_specs=in_specs,
            out_specs=out_spec,
        ),
        compiler_params=pltpu.CompilerParams(
            dimension_semantics=("parallel",),
            vmem_limit_bytes=vmem_limit,
        ),
        cost_estimate=cost,
    )(*flat_args)
    return out.reshape(B_pad, 1)[:B]


def init_params(key, input_size):
    """Deterministic synthetic parameters matching the PyTorch module shapes."""
    dims = [(input_size, 64), (64, 32), (32, 16), (16, 1)]
    keys = jax.random.split(key, 16)
    params = {}
    ki = 0
    for li, (din, dout) in enumerate(dims, start=1):
        bound = 1.0 / jnp.sqrt(jnp.float32(din))
        params[f"w{li}"] = jax.random.uniform(
            keys[ki], (din, dout), jnp.float32, -bound, bound)
        ki += 1
        params[f"b{li}"] = jax.random.uniform(
            keys[ki], (1, dout), jnp.float32, -bound, bound)
        ki += 1
    # BatchNorm params for the first three layers (out dims 64, 32, 16).
    for li, dout in zip((1, 2, 3), (64, 32, 16)):
        params[f"g{li}"] = 1.0 + 0.1 * jax.random.normal(keys[ki], (1, dout), jnp.float32)
        ki += 1
        params[f"beta{li}"] = 0.1 * jax.random.normal(keys[ki], (1, dout), jnp.float32)
        ki += 1
        params[f"mean{li}"] = 0.05 * jnp.arange(dout, dtype=jnp.float32).reshape(1, dout)
        params[f"var{li}"] = 1.0 + 0.01 * jnp.arange(dout, dtype=jnp.float32).reshape(1, dout)
    return params


def reference_forward(x, p):
    """Plain-JAX reference (unfolded BN, f32) for verification."""
    def bn(h, g, be, m, v):
        return (h - m) * lax.rsqrt(v + EPS) * g + be

    h = x @ p["w1"] + p["b1"]
    h = jnp.maximum(bn(h, p["g1"], p["beta1"], p["mean1"], p["var1"]), 0.0)
    h = h @ p["w2"] + p["b2"]
    h = jnp.maximum(bn(h, p["g2"], p["beta2"], p["mean2"], p["var2"]), 0.0)
    h = h @ p["w3"] + p["b3"]
    h = jnp.maximum(bn(h, p["g3"], p["beta3"], p["mean3"], p["var3"]), 0.0)
    logit = h @ p["w4"] + p["b4"]
    return jax.nn.sigmoid(logit)


if __name__ == "__main__":
    INPUT_SIZE = 32

    key = jax.random.PRNGKey(0)
    k_p, k1, k2 = jax.random.split(key, 3)
    params = init_params(k_p, INPUT_SIZE)

    # (1) tiny batch (pads 8 -> 128, one grid step), default bf16 compute path.
    x_small = jax.random.normal(k1, (8, INPUT_SIZE), jnp.float32)
    out_small = jax.block_until_ready(neologism_forward(x_small, params))
    ref_small = reference_forward(x_small, params)
    assert out_small.shape == (8, 1)
    assert jnp.allclose(out_small, ref_small, atol=3e-2), "mismatch (small, bf16)"

    # (2) ragged batch (pads 300 -> 384, three 128-row grid steps), bf16 path.
    x_rag = jax.random.normal(k2, (300, INPUT_SIZE), jnp.float32)
    out_rag = jax.block_until_ready(neologism_forward(x_rag, params))
    ref_rag = reference_forward(x_rag, params)
    assert out_rag.shape == (300, 1)
    assert jnp.allclose(out_rag, ref_rag, atol=3e-2), "mismatch (ragged, bf16)"

    # (3) float32 compute path, tighter tolerance.
    out_f32 = jax.block_until_ready(
        neologism_forward(x_small, params, compute_dtype=jnp.float32))
    assert out_f32.shape == (8, 1)
    assert jnp.allclose(out_f32, ref_small, atol=5e-3, rtol=1e-2), "mismatch (f32)"

    print("KERNEL_OK")
</pallas_src>

<mosaic_0001>
module attributes {stable_mosaic.version = 11 : i64} {
  func.func @_mlp_kernel(%arg0: i32, %arg1: memref<128x32xbf16, #tpu.memory_space<vmem>>, %arg2: memref<32x64xbf16, #tpu.memory_space<vmem>>, %arg3: memref<64x32xbf16, #tpu.memory_space<vmem>>, %arg4: memref<32x16xbf16, #tpu.memory_space<vmem>>, %arg5: memref<1x16xbf16, #tpu.memory_space<vmem>>, %arg6: memref<4x128xf32, #tpu.memory_space<vmem>>, %arg7: memref<1x128xf32, #tpu.memory_space<vmem>>) attributes {dimension_semantics = [#tpu.dimension_semantics<parallel>], iteration_bounds = array<i64: 1>, scalar_prefetch = 0 : i64, scratch_operands = 0 : i64, tpu.core_type = #tpu.core_type<tc>, window_params = [{transform_indices = @transform_0, window_bounds = array<i64: 128, 32>}, {pipeline_mode = #tpu.pipeline_mode<synchronous>, transform_indices = @transform_1, window_bounds = array<i64: 32, 64>}, {pipeline_mode = #tpu.pipeline_mode<synchronous>, transform_indices = @transform_2, window_bounds = array<i64: 64, 32>}, {pipeline_mode = #tpu.pipeline_mode<synchronous>, transform_indices = @transform_3, window_bounds = array<i64: 32, 16>}, {pipeline_mode = #tpu.pipeline_mode<synchronous>, transform_indices = @transform_4, window_bounds = array<i64: 1, 16>}, {pipeline_mode = #tpu.pipeline_mode<synchronous>, transform_indices = @transform_5, window_bounds = array<i64: 4, 128>}, {transform_indices = @transform_6, window_bounds = array<i64: 1, 128>}]} {
    %c0 = arith.constant 0 : index
    %c0_0 = arith.constant 0 : index
    %0 = vector.load %arg1[%c0, %c0_0] : memref<128x32xbf16, #tpu.memory_space<vmem>>, vector<128x32xbf16>
    %c0_1 = arith.constant 0 : index
    %c0_2 = arith.constant 0 : index
    %1 = vector.load %arg2[%c0_1, %c0_2] : memref<32x64xbf16, #tpu.memory_space<vmem>>, vector<32x64xbf16>
    %cst = arith.constant dense<0.000000e+00> : vector<128x64xf32>
    %2 = tpu.matmul %0, %1, %cst {dimension_numbers = #tpu.dot_dimension_numbers<[1], [0], [0], [1], [0, 0, 1, 1], [], []>} : vector<128x32xbf16>, vector<32x64xbf16>, vector<128x64xf32> -> vector<128x64xf32>
    %c0_3 = arith.constant 0 : index
    %c0_4 = arith.constant 0 : index
    %3 = vector.load %arg6[%c0_3, %c0_4] : memref<4x128xf32, #tpu.memory_space<vmem>>, vector<1x64xf32>
    %4 = vector.broadcast %3 : vector<1x64xf32> to vector<128x64xf32>
    %5 = arith.addf %2, %4 : vector<128x64xf32>
    %cst_5 = arith.constant 0.000000e+00 : f32
    %6 = vector.broadcast %cst_5 : f32 to vector<128x64xf32>
    %7 = arith.maximumf %5, %6 : vector<128x64xf32>
    %8 = arith.truncf %7 : vector<128x64xf32> to vector<128x64xbf16>
    %c0_6 = arith.constant 0 : index
    %c0_7 = arith.constant 0 : index
    %9 = vector.load %arg3[%c0_6, %c0_7] : memref<64x32xbf16, #tpu.memory_space<vmem>>, vector<64x32xbf16>
    %cst_8 = arith.constant dense<0.000000e+00> : vector<128x32xf32>
    %10 = tpu.matmul %8, %9, %cst_8 {dimension_numbers = #tpu.dot_dimension_numbers<[1], [0], [0], [1], [0, 0, 1, 1], [], []>} : vector<128x64xbf16>, vector<64x32xbf16>, vector<128x32xf32> -> vector<128x32xf32>
    %c1 = arith.constant 1 : index
    %c0_9 = arith.constant 0 : index
    %11 = vector.load %arg6[%c1, %c0_9] : memref<4x128xf32, #tpu.memory_space<vmem>>, vector<1x32xf32>
    %12 = vector.broadcast %11 : vector<1x32xf32> to vector<128x32xf32>
    %13 = arith.addf %10, %12 : vector<128x32xf32>
    %cst_10 = arith.constant 0.000000e+00 : f32
    %14 = vector.broadcast %cst_10 : f32 to vector<128x32xf32>
    %15 = arith.maximumf %13, %14 : vector<128x32xf32>
    %16 = arith.truncf %15 : vector<128x32xf32> to vector<128x32xbf16>
    %c0_11 = arith.constant 0 : index
    %c0_12 = arith.constant 0 : index
    %17 = vector.load %arg4[%c0_11, %c0_12] : memref<32x16xbf16, #tpu.memory_space<vmem>>, vector<32x16xbf16>
    %cst_13 = arith.constant dense<0.000000e+00> : vector<128x16xf32>
    %18 = tpu.matmul %16, %17, %cst_13 {dimension_numbers = #tpu.dot_dimension_numbers<[1], [0], [0], [1], [0, 0, 1, 1], [], []>} : vector<128x32xbf16>, vector<32x16xbf16>, vector<128x16xf32> -> vector<128x16xf32>
    %c2 = arith.constant 2 : index
    %c0_14 = arith.constant 0 : index
    %19 = vector.load %arg6[%c2, %c0_14] : memref<4x128xf32, #tpu.memory_space<vmem>>, vector<1x16xf32>
    %20 = vector.broadcast %19 : vector<1x16xf32> to vector<128x16xf32>
    %21 = arith.addf %18, %20 : vector<128x16xf32>
    %cst_15 = arith.constant 0.000000e+00 : f32
    %22 = vector.broadcast %cst_15 : f32 to vector<128x16xf32>
    %23 = arith.maximumf %21, %22 : vector<128x16xf32>
    %c0_16 = arith.constant 0 : index
    %c0_17 = arith.constant 0 : index
    %24 = vector.load %arg5[%c0_16, %c0_17] : memref<1x16xbf16, #tpu.memory_space<vmem>>, vector<1x16xbf16>
    %25 = arith.truncf %23 : vector<128x16xf32> to vector<128x16xbf16>
    %cst_18 = arith.constant dense<0.000000e+00> : vector<1x128xf32>
    %26 = tpu.matmul %24, %25, %cst_18 {dimension_numbers = #tpu.dot_dimension_numbers<[1], [1], [0], [0], [0, 0, 1, 0], [], []>} : vector<1x16xbf16>, vector<128x16xbf16>, vector<1x128xf32> -> vector<1x128xf32>
    %c3 = arith.constant 3 : index
    %c0_19 = arith.constant 0 : index
    %27 = vector.load %arg6[%c3, %c0_19] : memref<4x128xf32, #tpu.memory_space<vmem>>, vector<1x1xf32>
    %28 = vector.broadcast %27 : vector<1x1xf32> to vector<1x128xf32>
    %29 = arith.addf %26, %28 : vector<1x128xf32>
    %30 = arith.negf %29 : vector<1x128xf32>
    %31 = math.exp %30 : vector<1x128xf32>
    %cst_20 = arith.constant 1.000000e+00 : f32
    %32 = vector.broadcast %cst_20 : f32 to vector<1x128xf32>
    %33 = arith.addf %32, %31 : vector<1x128xf32>
    %34 = arith.divf %32, %33 : vector<1x128xf32>
    %c0_21 = arith.constant 0 : index
    %c0_22 = arith.constant 0 : index
    %35 = vector.load %arg7[%c0_21, %c0_22] : memref<1x128xf32, #tpu.memory_space<vmem>>, vector<1x128xf32>
    tpu.vector_store %arg7[%c0_21, %c0_22], %34 {strides = array<i32>} : memref<1x128xf32, #tpu.memory_space<vmem>>, vector<1x128xf32>,
    return
  }
  func.func @transform_0(%arg0: i32) -> (i32, i32) {
    %c0_i32 = arith.constant 0 : i32
    %c0_i32_0 = arith.constant 0 : i32
    return %arg0, %c0_i32 : i32, i32
  }
  func.func @transform_1(%arg0: i32) -> (i32, i32) {
    %c0_i32 = arith.constant 0 : i32
    %c0_i32_0 = arith.constant 0 : i32
    %c0_i32_1 = arith.constant 0 : i32
    return %c0_i32, %c0_i32_0 : i32, i32
  }
  func.func @transform_2(%arg0: i32) -> (i32, i32) {
    %c0_i32 = arith.constant 0 : i32
    %c0_i32_0 = arith.constant 0 : i32
    %c0_i32_1 = arith.constant 0 : i32
    return %c0_i32, %c0_i32_0 : i32, i32
  }
  func.func @transform_3(%arg0: i32) -> (i32, i32) {
    %c0_i32 = arith.constant 0 : i32
    %c0_i32_0 = arith.constant 0 : i32
    %c0_i32_1 = arith.constant 0 : i32
    return %c0_i32, %c0_i32_0 : i32, i32
  }
  func.func @transform_4(%arg0: i32) -> (i32, i32) {
    %c0_i32 = arith.constant 0 : i32
    %c0_i32_0 = arith.constant 0 : i32
    %c0_i32_1 = arith.constant 0 : i32
    return %c0_i32, %c0_i32_0 : i32, i32
  }
  func.func @transform_5(%arg0: i32) -> (i32, i32) {
    %c0_i32 = arith.constant 0 : i32
    %c0_i32_0 = arith.constant 0 : i32
    %c0_i32_1 = arith.constant 0 : i32
    return %c0_i32, %c0_i32_0 : i32, i32
  }
  func.func @transform_6(%arg0: i32) -> (i32, i32) {
    %c0_i32 = arith.constant 0 : i32
    %c0_i32_0 = arith.constant 0 : i32
    return %c0_i32, %arg0 : i32, i32
  }
}

</mosaic_0001>

<llo_original>
// kernel: neologism_forward.1
$region0: #{neologism_forward.1}
  #allocation0 [shape = 'u32[]', space=smem, size = 0x4, offset = 0x4, fixed_abs, tag = 'smem constant byte address 0x4 - core index']
  #allocation1 [shape = 'u32[72,128]{1,0:T(1,128)}', space=vmem, size = 0x9000, scoped, tag = 'internal scratch']
  %s0 = inlined_call_operand.vmem [shape: bf16[128,32], index: 0, kind: input, shape index: {}]
  %s1 = inlined_call_operand.vmem [shape: bf16[32,64], index: 1, kind: input, shape index: {}]
  %s2 = inlined_call_operand.vmem [shape: bf16[64,32], index: 2, kind: input, shape index: {}]
  %s3 = inlined_call_operand.vmem [shape: bf16[32,16], index: 3, kind: input, shape index: {}]
  %s4 = inlined_call_operand.vmem [shape: bf16[1,16], index: 4, kind: input, shape index: {}]
  %s5 = inlined_call_operand.vmem [shape: f32[4,128], index: 5, kind: input, shape index: {}]
  %s6 = inlined_call_operand.vmem [shape: f32[1,128], index: 6, kind: output, shape index: {}]
  %s7 = sld [smem:[#allocation0]]
  $region34: #{neologism_forward.1} parent=0
    _
  %s9 = ssub.s32 1, %s7
  %s10 = scalar_select 0, %s9, %s7
  // Predicated region
  $region2: #{neologism_forward.1} parent=0 // pred_check
    _
  $region3: #{neologism_forward.1} parent=0 // pred_check_branch
    %12 = sbr.rel (0) target = $region5
  $region4: #{neologism_forward.1} parent=0 // pred_region
    _
  $region5: #{neologism_forward.1} parent=0 // pred_fallthru
    _
  // Predicated region
  $region6: #{neologism_forward.1} parent=0 // pred_check
    _
  $region7: #{neologism_forward.1} parent=0 // pred_check_branch
    %14 = sbr.rel (0) target = $region9
  $region8: #{neologism_forward.1} parent=0 // pred_region
    _
  $region9: #{neologism_forward.1} parent=0 // pred_fallthru
    _
  // Predicated region
  $region10: #{neologism_forward.1} parent=0 // pred_check
    _
  $region11: #{neologism_forward.1} parent=0 // pred_check_branch
    %16 = sbr.rel (0) target = $region13
  $region12: #{neologism_forward.1} parent=0 // pred_region
    _
  $region13: #{neologism_forward.1} parent=0 // pred_fallthru
    _
  // Predicated region
  $region14: #{neologism_forward.1} parent=0 // pred_check
    _
  $region15: #{neologism_forward.1} parent=0 // pred_check_branch
    %18 = sbr.rel (0) target = $region17
  $region16: #{neologism_forward.1} parent=0 // pred_region
    _
  $region17: #{neologism_forward.1} parent=0 // pred_fallthru
    _
  // Predicated region
  $region18: #{neologism_forward.1} parent=0 // pred_check
    _
  $region19: #{neologism_forward.1} parent=0 // pred_check_branch
    %20 = sbr.rel (0) target = $region21
  $region20: #{neologism_forward.1} parent=0 // pred_region
    _
  $region21: #{neologism_forward.1} parent=0 // pred_fallthru
    _
  // Predicated region
  $region22: #{neologism_forward.1} parent=0 // pred_check
    _
  $region23: #{neologism_forward.1} parent=0 // pred_check_branch
    %22 = sbr.rel (0) target = $region25
  $region24: #{neologism_forward.1} parent=0 // pred_region
    _
  $region25: #{neologism_forward.1} parent=0 // pred_fallthru
    _
  %v24 = vld [vmem:[%s0] sm:$0xf]
  %v25 = vld [vmem:[%s0 + $0x4] sm:$0xf]
  %v26 = vld [vmem:[%s0 + $0x8] sm:$0xf]
  %v27 = vld [vmem:[%s0 + $0xc] sm:$0xf]
  %v28 = vld [vmem:[%s0 + $0x10] sm:$0xf]
  %v29 = vld [vmem:[%s0 + $0x14] sm:$0xf]
  %v30 = vld [vmem:[%s0 + $0x18] sm:$0xf]
  %v31 = vld [vmem:[%s0 + $0x1c] sm:$0xf]
  %v32 = vld [vmem:[%s0 + $0x20] sm:$0xf]
  %v33 = vld [vmem:[%s0 + $0x24] sm:$0xf]
  %v34 = vld [vmem:[%s0 + $0x28] sm:$0xf]
  %v35 = vld [vmem:[%s0 + $0x2c] sm:$0xf]
  %v36 = vld [vmem:[%s0 + $0x30] sm:$0xf]
  %v37 = vld [vmem:[%s0 + $0x34] sm:$0xf]
  %v38 = vld [vmem:[%s0 + $0x38] sm:$0xf]
  %v39 = vld [vmem:[%s0 + $0x3c] sm:$0xf]
  %v40 = vld [vmem:[%s1] sm:$0xf]
  %v41 = vld [vmem:[%s1 + $0x4] sm:$0xf]
  %v42 = vld [vmem:[%s1 + $0x8] sm:$0xf]
  %v43 = vld [vmem:[%s1 + $0xc] sm:$0xf]
  %v44 = vld [vmem:[%s5] sm:$0x1]
  %v45 = vperm.slane %v44, 0
  %v62 = vunpack.c.l.b16 %v24
  %v63 = vunpack.c.l.b16 %v25
  %v64 = vunpack.c.l.b16 %v26
  %v65 = vunpack.c.l.b16 %v27
  %v66 = vunpack.c.l.b16 %v28
  %v67 = vunpack.c.l.b16 %v29
  %v68 = vunpack.c.l.b16 %v30
  %v69 = vunpack.c.l.b16 %v31
  %v70 = vunpack.c.l.b16 %v32
  %v71 = vunpack.c.l.b16 %v33
  %v72 = vunpack.c.l.b16 %v34
  %v73 = vunpack.c.l.b16 %v35
  %v74 = vunpack.c.l.b16 %v36
  %v75 = vunpack.c.l.b16 %v37
  %v76 = vunpack.c.l.b16 %v38
  %v77 = vunpack.c.l.b16 %v39
  %v78 = vpack.c.b16 %v63, %v62
  %v79 = vpack.c.b16 %v65, %v64
  %v80 = vpack.c.b16 %v67, %v66
  %v81 = vpack.c.b16 %v69, %v68
  %v82 = vpack.c.b16 %v71, %v70
  %v83 = vpack.c.b16 %v73, %v72
  %v84 = vpack.c.b16 %v75, %v74
  %v85 = vpack.c.b16 %v77, %v76
  %v90 = vunpack.c.l.b16 %v40
  %v91 = vunpack.c.l.b16 %v41
  %v92 = vunpack.c.l.b16 %v42
  %v93 = vunpack.c.l.b16 %v43
  %v94 = vpack.c.b16 %v91, %v90
  %v95 = vpack.c.b16 %v93, %v92
  %vm98 = vcmask 261120
  %v100 = vsel %vm98, %v78, 0
  %v103 = vsel %vm98, %v79, 0
  %v106 = vsel %vm98, %v80, 0
  %v109 = vsel %vm98, %v81, 0
  %v112 = vsel %vm98, %v82, 0
  %v115 = vsel %vm98, %v83, 0
  %v118 = vsel %vm98, %v84, 0
  %v121 = vsel %vm98, %v85, 0
  %123 = vmatpush.bf16.msra.mxu0 0
  %124 = vmatpush.bf16.msra.mxu0 0
  %125 = vmatpush.bf16.msra.mxu0 0
  %126 = vmatpush.bf16.msra.mxu0 0
  %127 = vmatpush.bf16.msra.mxu0 0
  %128 = vmatpush.bf16.msra.mxu0 0
  %129 = vmatpush.bf16.msra.mxu0 %v95
  %130 = vmatpush.bf16.msra.mxu0 %v94
  %131 = vmatmul.bf16.gmra.mxu0 %v100
  %v132 = vpop.f32.mrf.mxu0
  %v133 = vadd.f32 %v45, %v132
  %v134 = vpop.f32.mrf.mxu0
  %v135 = vadd.f32 %v45, %v134
  %136 = vmatmul.bf16.gmra.mxu0 %v103
  %v137 = vpop.f32.mrf.mxu0
  %v138 = vadd.f32 %v45, %v137
  %v139 = vpop.f32.mrf.mxu0
  %v140 = vadd.f32 %v45, %v139
  %141 = vmatmul.bf16.gmra.mxu0 %v106
  %v142 = vpop.f32.mrf.mxu0
  %v143 = vadd.f32 %v45, %v142
  %v144 = vpop.f32.mrf.mxu0
  %v145 = vadd.f32 %v45, %v144
  %146 = vmatmul.bf16.gmra.mxu0 %v109
  %v147 = vpop.f32.mrf.mxu0
  %v148 = vadd.f32 %v45, %v147
  %v149 = vpop.f32.mrf.mxu0
  %v150 = vadd.f32 %v45, %v149
  %151 = vmatmul.bf16.gmra.mxu0 %v112
  %v152 = vpop.f32.mrf.mxu0
  %v153 = vadd.f32 %v45, %v152
  %v154 = vpop.f32.mrf.mxu0
  %v155 = vadd.f32 %v45, %v154
  %156 = vmatmul.bf16.gmra.mxu0 %v115
  %v157 = vpop.f32.mrf.mxu0
  %v158 = vadd.f32 %v45, %v157
  %v159 = vpop.f32.mrf.mxu0
  %v160 = vadd.f32 %v45, %v159
  %161 = vmatmul.bf16.gmra.mxu0 %v118
  %v162 = vpop.f32.mrf.mxu0
  %v163 = vadd.f32 %v45, %v162
  %v164 = vpop.f32.mrf.mxu0
  %v165 = vadd.f32 %v45, %v164
  %166 = vmatmul.bf16.gmra.mxu0 %v121
  %v167 = vpop.f32.mrf.mxu0
  %v168 = vadd.f32 %v45, %v167
  %v169 = vpop.f32.mrf.mxu0
  %v170 = vadd.f32 %v45, %v169
  %171 = vdwg.mxu0
  %v172 = vmax.f32 %v133, 0.0
  %v173 = vmax.f32 %v135, 0.0
  %v174 = vmax.f32 %v138, 0.0
  %v175 = vmax.f32 %v140, 0.0
  %v176 = vmax.f32 %v143, 0.0
  %v177 = vmax.f32 %v145, 0.0
  %v178 = vmax.f32 %v148, 0.0
  %v179 = vmax.f32 %v150, 0.0
  %v180 = vmax.f32 %v153, 0.0
  %v181 = vmax.f32 %v155, 0.0
  %v182 = vmax.f32 %v158, 0.0
  %v183 = vmax.f32 %v160, 0.0
  %v184 = vmax.f32 %v163, 0.0
  %v185 = vmax.f32 %v165, 0.0
  %v186 = vmax.f32 %v168, 0.0
  %v187 = vmax.f32 %v170, 0.0
  %v188 = vpack.c.bf16 %v173, %v172
  %v189 = vpack.c.bf16 %v175, %v174
  %v190 = vpack.c.bf16 %v177, %v176
  %v191 = vpack.c.bf16 %v179, %v178
  %v192 = vpack.c.bf16 %v181, %v180
  %v193 = vpack.c.bf16 %v183, %v182
  %v194 = vpack.c.bf16 %v185, %v184
  %v195 = vpack.c.bf16 %v187, %v186
  %v196 = vld [vmem:[%s2] sm:$0xf]
  %v197 = vld [vmem:[%s2 + $0x4] sm:$0xf]
  %v198 = vld [vmem:[%s2 + $0x8] sm:$0xf]
  %v199 = vld [vmem:[%s2 + $0xc] sm:$0xf]
  %v200 = vld [vmem:[%s2 + $0x10] sm:$0xf]
  %v201 = vld [vmem:[%s2 + $0x14] sm:$0xf]
  %v202 = vld [vmem:[%s2 + $0x18] sm:$0xf]
  %v203 = vld [vmem:[%s2 + $0x1c] sm:$0xf]
  %v204 = vld [vmem:[%s5 + $0x1] sm:$0x1]
  %v205 = vperm.slane %v204, 0
  %v214 = vunpack.c.l.b16 %v196
  %v215 = vunpack.c.l.b16 %v197
  %v216 = vunpack.c.l.b16 %v198
  %v217 = vunpack.c.l.b16 %v199
  %v218 = vunpack.c.l.b16 %v200
  %v219 = vunpack.c.l.b16 %v201
  %v220 = vunpack.c.l.b16 %v202
  %v221 = vunpack.c.l.b16 %v203
  %v222 = vpack.c.b16 %v215, %v214
  %v223 = vpack.c.b16 %v217, %v216
  %v224 = vpack.c.b16 %v219, %v218
  %v225 = vpack.c.b16 %v221, %v220
  %vm230 = vcmask 523264
  %v232 = vsel %vm230, %v188, 0
  %v235 = vsel %vm230, %v189, 0
  %v238 = vsel %vm230, %v190, 0
  %v241 = vsel %vm230, %v191, 0
  %v244 = vsel %vm230, %v192, 0
  %v247 = vsel %vm230, %v193, 0
  %v250 = vsel %vm230, %v194, 0
  %v253 = vsel %vm230, %v195, 0
  %255 = vmatpush.bf16.msra.mxu0 0
  %256 = vmatpush.bf16.msra.mxu0 0
  %257 = vmatpush.bf16.msra.mxu0 0
  %258 = vmatpush.bf16.msra.mxu0 0
  %259 = vmatpush.bf16.msra.mxu0 %v225
  %260 = vmatpush.bf16.msra.mxu0 %v224
  %261 = vmatpush.bf16.msra.mxu0 %v223
  %262 = vmatpush.bf16.msra.mxu0 %v222
  %263 = vmatmul.bf16.gmra.mxu0 %v232
  %v264 = vpop.f32.mrf.mxu0
  %v265 = vadd.f32 %v205, %v264
  %v266 = vpop.f32.mrf.mxu0
  %v267 = vadd.f32 %v205, %v266
  %268 = vmatmul.bf16.gmra.mxu0 %v235
  %v269 = vpop.f32.mrf.mxu0
  %v270 = vadd.f32 %v205, %v269
  %v271 = vpop.f32.mrf.mxu0
  %v272 = vadd.f32 %v205, %v271
  %273 = vmatmul.bf16.gmra.mxu0 %v238
  %v274 = vpop.f32.mrf.mxu0
  %v275 = vadd.f32 %v205, %v274
  %v276 = vpop.f32.mrf.mxu0
  %v277 = vadd.f32 %v205, %v276
  %278 = vmatmul.bf16.gmra.mxu0 %v241
  %v279 = vpop.f32.mrf.mxu0
  %v280 = vadd.f32 %v205, %v279
  %v281 = vpop.f32.mrf.mxu0
  %v282 = vadd.f32 %v205, %v281
  %283 = vmatmul.bf16.gmra.mxu0 %v244
  %v284 = vpop.f32.mrf.mxu0
  %v285 = vadd.f32 %v205, %v284
  %v286 = vpop.f32.mrf.mxu0
  %v287 = vadd.f32 %v205, %v286
  %288 = vmatmul.bf16.gmra.mxu0 %v247
  %v289 = vpop.f32.mrf.mxu0
  %v290 = vadd.f32 %v205, %v289
  %v291 = vpop.f32.mrf.mxu0
  %v292 = vadd.f32 %v205, %v291
  %293 = vmatmul.bf16.gmra.mxu0 %v250
  %v294 = vpop.f32.mrf.mxu0
  %v295 = vadd.f32 %v205, %v294
  %v296 = vpop.f32.mrf.mxu0
  %v297 = vadd.f32 %v205, %v296
  %298 = vmatmul.bf16.gmra.mxu0 %v253
  %v299 = vpop.f32.mrf.mxu0
  %v300 = vadd.f32 %v205, %v299
  %v301 = vpop.f32.mrf.mxu0
  %v302 = vadd.f32 %v205, %v301
  %303 = vdwg.mxu0
  %v304 = vmax.f32 %v265, 0.0
  %v305 = vmax.f32 %v267, 0.0
  %v306 = vmax.f32 %v270, 0.0
  %v307 = vmax.f32 %v272, 0.0
  %v308 = vmax.f32 %v275, 0.0
  %v309 = vmax.f32 %v277, 0.0
  %v310 = vmax.f32 %v280, 0.0
  %v311 = vmax.f32 %v282, 0.0
  %v312 = vmax.f32 %v285, 0.0
  %v313 = vmax.f32 %v287, 0.0
  %v314 = vmax.f32 %v290, 0.0
  %v315 = vmax.f32 %v292, 0.0
  %v316 = vmax.f32 %v295, 0.0
  %v317 = vmax.f32 %v297, 0.0
  %v318 = vmax.f32 %v300, 0.0
  %v319 = vmax.f32 %v302, 0.0
  %v320 = vpack.c.bf16 %v305, %v304
  %v321 = vpack.c.bf16 %v307, %v306
  %v322 = vpack.c.bf16 %v309, %v308
  %v323 = vpack.c.bf16 %v311, %v310
  %v324 = vpack.c.bf16 %v313, %v312
  %v325 = vpack.c.bf16 %v315, %v314
  %v326 = vpack.c.bf16 %v317, %v316
  %v327 = vpack.c.bf16 %v319, %v318
  %v328 = vld [vmem:[%s3] sm:$0xf]
  %v329 = vld [vmem:[%s3 + $0x4] sm:$0xf]
  %v330 = vld [vmem:[%s3 + $0x8] sm:$0xf]
  %v331 = vld [vmem:[%s3 + $0xc] sm:$0xf]
  %v332 = vld [vmem:[%s5 + $0x2] sm:$0x1]
  %v333 = vperm.slane %v332, 0
  %v338 = vunpack.c.l.b16 %v328
  %v339 = vunpack.c.l.b16 %v329
  %v340 = vunpack.c.l.b16 %v330
  %v341 = vunpack.c.l.b16 %v331
  %v342 = vpack.c.b16 %v339, %v338
  %v343 = vpack.c.b16 %v341, %v340
  %v347 = vsel %vm98, %v320, 0
  %v350 = vsel %vm98, %v321, 0
  %v353 = vsel %vm98, %v322, 0
  %v356 = vsel %vm98, %v323, 0
  %v359 = vsel %vm98, %v324, 0
  %v362 = vsel %vm98, %v325, 0
  %v365 = vsel %vm98, %v326, 0
  %v368 = vsel %vm98, %v327, 0
  %370 = vmatpush.bf16.msra.mxu0 0
  %371 = vmatpush.bf16.msra.mxu0 0
  %372 = vmatpush.bf16.msra.mxu0 0
  %373 = vmatpush.bf16.msra.mxu0 0
  %374 = vmatpush.bf16.msra.mxu0 0
  %375 = vmatpush.bf16.msra.mxu0 0
  %376 = vmatpush.bf16.msra.mxu0 %v343
  %377 = vmatpush.bf16.msra.mxu0 %v342
  %378 = vmatmul.bf16.gmra.mxu0 %v347
  %v379 = vpop.f32.mrf.mxu0
  %v380 = vadd.f32 %v333, %v379
  %v381 = vpop.f32.mrf.mxu0
  %v382 = vadd.f32 %v333, %v381
  %383 = vmatmul.bf16.gmra.mxu0 %v350
  %v384 = vpop.f32.mrf.mxu0
  %v385 = vadd.f32 %v333, %v384
  %v386 = vpop.f32.mrf.mxu0
  %v387 = vadd.f32 %v333, %v386
  %388 = vmatmul.bf16.gmra.mxu0 %v353
  %v389 = vpop.f32.mrf.mxu0
  %v390 = vadd.f32 %v333, %v389
  %v391 = vpop.f32.mrf.mxu0
  %v392 = vadd.f32 %v333, %v391
  %393 = vmatmul.bf16.gmra.mxu0 %v356
  %v394 = vpop.f32.mrf.mxu0
  %v395 = vadd.f32 %v333, %v394
  %v396 = vpop.f32.mrf.mxu0
  %v397 = vadd.f32 %v333, %v396
  %398 = vmatmul.bf16.gmra.mxu0 %v359
  %v399 = vpop.f32.mrf.mxu0
  %v400 = vadd.f32 %v333, %v399
  %v401 = vpop.f32.mrf.mxu0
  %v402 = vadd.f32 %v333, %v401
  %403 = vmatmul.bf16.gmra.mxu0 %v362
  %v404 = vpop.f32.mrf.mxu0
  %v405 = vadd.f32 %v333, %v404
  %v406 = vpop.f32.mrf.mxu0
  %v407 = vadd.f32 %v333, %v406
  %408 = vmatmul.bf16.gmra.mxu0 %v365
  %v409 = vpop.f32.mrf.mxu0
  %v410 = vadd.f32 %v333, %v409
  %v411 = vpop.f32.mrf.mxu0
  %v412 = vadd.f32 %v333, %v411
  %413 = vmatmul.bf16.gmra.mxu0 %v368
  %v414 = vpop.f32.mrf.mxu0
  %v415 = vadd.f32 %v333, %v414
  %v416 = vpop.f32.mrf.mxu0
  %v417 = vadd.f32 %v333, %v416
  %418 = vdwg.mxu0
  %v419 = vmax.f32 %v380, 0.0
  %v420 = vmax.f32 %v382, 0.0
  %v421 = vmax.f32 %v385, 0.0
  %v422 = vmax.f32 %v387, 0.0
  %v423 = vmax.f32 %v390, 0.0
  %v424 = vmax.f32 %v392, 0.0
  %v425 = vmax.f32 %v395, 0.0
  %v426 = vmax.f32 %v397, 0.0
  %v427 = vmax.f32 %v400, 0.0
  %v428 = vmax.f32 %v402, 0.0
  %v429 = vmax.f32 %v405, 0.0
  %v430 = vmax.f32 %v407, 0.0
  %v431 = vmax.f32 %v410, 0.0
  %v432 = vmax.f32 %v412, 0.0
  %v433 = vmax.f32 %v415, 0.0
  %v434 = vmax.f32 %v417, 0.0
  %v435 = vld [vmem:[%s4] sm:$0x1]
  %v436 = vpack.c.bf16 %v420, %v419
  %v437 = vpack.c.bf16 %v422, %v421
  %v438 = vpack.c.bf16 %v424, %v423
  %v439 = vpack.c.bf16 %v426, %v425
  %v440 = vpack.c.bf16 %v428, %v427
  %v441 = vpack.c.bf16 %v430, %v429
  %v442 = vpack.c.bf16 %v432, %v431
  %v443 = vpack.c.bf16 %v434, %v433
  %v444 = vld [vmem:[%s5 + $0x3] sm:$0x1]
  %446 = vset.pattern.permute.xlu0 0
  %447 = vperm.xlu0 %446, %v444
  %v448 = vpop.permute.xlu0 %447
  %vm450 = vcmask 130048
  %v452 = vsel %vm450, %v435, 0
  %v455 = vsel %vm450, %v436, 0
  %v458 = vsel %vm450, %v437, 0
  %v461 = vsel %vm450, %v438, 0
  %v464 = vsel %vm450, %v439, 0
  %v467 = vsel %vm450, %v440, 0
  %v470 = vsel %vm450, %v441, 0
  %v473 = vsel %vm450, %v442, 0
  %v476 = vsel %vm450, %v443, 0
  %478 = vmatpush.bf16.xpose.msra.mxu0 %v476
  %479 = vmatpush.bf16.xpose.msra.mxu0 %v473
  %480 = vmatpush.bf16.xpose.msra.mxu0 %v470
  %481 = vmatpush.bf16.xpose.msra.mxu0 %v467
  %482 = vmatpush.bf16.xpose.msra.mxu0 %v464
  %483 = vmatpush.bf16.xpose.msra.mxu0 %v461
  %484 = vmatpush.bf16.xpose.msra.mxu0 %v458
  %485 = vmatpush.bf16.xpose.msra.mxu0 %v455
  %486 = vmatmul.bf16.gmra.mxu0 %v452
  %v487 = vpop.f32.mrf.mxu0
  %v488 = vadd.f32 %v448, %v487
  %v489 = vpop.f32.mrf.mxu0
  %490 = vdwg.mxu0
  %v491 = vxor.u32 %v488, 2147483648
  %v492 = vmul.f32 %v491, 1.442695
  %v493 = vpow.pop %v492
  %v494 = vadd.f32 %v493, 1.0
  %v495 = vrcp.pop %v494
  %v496 = vmul.f32 %v494, %v495
  %v497 = vsub.f32 1.0, %v496
  %v498 = vmul.f32 %v495, %v497
  %v499 = vadd.f32 %v495, %v498
  %vm500 = vweird.f32 %v494
  %vm501 = vweird.f32 %v495
  %vm502 = vmor %vm500, %vm501
  %v503 = vsel %vm502, %v495, %v499
  %v504 = vand.u32 2147483647, %v494
  %vm505 = vcmp.eq.f32.partialorder %v504, 8.507059e+37
  %v506 = vand.u32 %v494, 2147483648
  %v507 = vor.u32 1.1754944e-38, %v506
  %v508 = vsel %vm505, %v507, %v503
  %v509 = vmul.f32 1.0, %v508
  %510 = vst [vmem:[%s6] sm:$0x1] %v509
  // Predicated region
  $region26: #{neologism_forward.1} parent=0 // pred_check
    _
  $region27: #{neologism_forward.1} parent=0 // pred_check_branch
    %512 = sbr.rel (0) target = $region29
  $region28: #{neologism_forward.1} parent=0 // pred_region
    _
  $region29: #{neologism_forward.1} parent=0 // pred_fallthru
    _
  // Predicated region
  $region30: #{neologism_forward.1} parent=0 // pred_check
    _
  $region31: #{neologism_forward.1} parent=0 // pred_check_branch
    %514 = sbr.rel (0) target = $region33
  $region32: #{neologism_forward.1} parent=0 // pred_region
    _
  $region33: #{neologism_forward.1} parent=0 // pred_fallthru
    _

</llo_original>
